<compile_context>
chip_gen: v7x
topology: tpu7x:2x2x1
jax: 0.10.0
libtpu: 0.0.40
codegen_flags: <defaults>
</compile_context>

<pallas_src>
import functools
import math

import numpy as np
import jax
import jax.numpy as jnp
from jax.experimental import pallas as pl
from jax.experimental.pallas import tpu as pltpu


def _adaptive_bins(in_size: int, out_size: int):
    """PyTorch AdaptiveAvgPool bin boundaries (start, end) per output index."""
    starts = [(i * in_size) // out_size for i in range(out_size)]
    ends = [math.ceil((i + 1) * in_size / out_size) for i in range(out_size)]
    return tuple(zip(starts, ends))


def _pool_matrix(Ho: int, Wo: int, out: int = 4) -> np.ndarray:
    """(Ho*Wo, out*out) averaging matrix reproducing AdaptiveAvgPool2d + Flatten."""
    hb, wb = _adaptive_bins(Ho, out), _adaptive_bins(Wo, out)
    P = np.zeros((Ho * Wo, out * out), np.float32)
    for oi, (hs, he) in enumerate(hb):
        for oj, (ws, we) in enumerate(wb):
            col = oi * out + oj
            inv = 1.0 / float((he - hs) * (we - ws))
            for h in range(hs, he):
                for w in range(ws, we):
                    P[h * Wo + w, col] = inv
    return P


def _fused_kernel(cparams_ref, x_ref, wf_ref, lb_ref, o_ref, *, Ho, Wo):
    # cparams_ref: SMEM (28,)      27 conv taps (flat index c*9 + ki*3 + kj) + bias
    # x_ref:       VMEM (TB, 3, H, W) batch tile of the input
    # wf_ref:      VMEM (Ho*Wo, 32)   pool_matrix @ lin_w.T (pool+flatten+linear fold)
    # lb_ref:      VMEM (1, 32)       linear bias
    x = x_ref[...].astype(jnp.float32)
    TB = x.shape[0]

    # --- Conv2d(3 -> 1, k=3, VALID) + bias + ReLU as 27 scalar-operand MACs ---
    # kj is the lane-axis shift: hoist it outermost so each lane shift is done
    # once and reused across the 9 (c, ki) taps.
    acc = jnp.zeros((TB, Ho, Wo), jnp.float32)
    for kj in range(3):
        x_kj = x[:, :, :, kj:kj + Wo]              # (TB, 3, H, Wo)  one lane shift
        for ki in range(3):
            x_k = x_kj[:, :, ki:ki + Ho, :]        # (TB, 3, Ho, Wo) sublane shift
            for c in range(3):
                acc = acc + x_k[:, c] * cparams_ref[c * 9 + ki * 3 + kj]
    conv = jnp.maximum(acc + cparams_ref[27], 0.0)  # ReLU, (TB, Ho, Wo)

    # --- AdaptiveAvgPool2d(4) + Flatten + Linear(16, 32) as one MXU dot ---
    flat = conv.reshape(TB, Ho * Wo)
    out = jnp.dot(flat, wf_ref[...], preferred_element_type=jnp.float32)
    o_ref[...] = (out + lb_ref[...]).astype(o_ref.dtype)


def _pick_batch_tile(B: int, H: int, W: int, itemsize: int) -> int:
    """Batch tile sized for ~4 MiB/buffer (double-buffered) and (8,·) alignment."""
    per_sample = 3 * H * W * itemsize
    tb = max(1, min(B, (4 * 1024 * 1024) // max(per_sample, 1)))
    if tb >= B:
        return B
    tb = max(8, (tb // 8) * 8)          # keep sublane-aligned output blocks
    while B % tb != 0:
        tb -= 8
        if tb < 8:
            return B                    # fall back to a single batch block
    return tb


def module_forward(x, conv_w, conv_b, lin_w, lin_b):
    """x: (B, 3, H, W) NCHW; conv_w: (1, 3, 3, 3); conv_b: (1,);
    lin_w: (32, 16); lin_b: (32,).  Returns (B, 32) float32."""
    B, C, H, W = x.shape
    assert C == 3 and H >= 3 and W >= 3
    Ho, Wo = H - 2, W - 2

    # Fold AdaptiveAvgPool2d(4) + Flatten + Linear into one (Ho*Wo, 32) matrix.
    P = jnp.asarray(_pool_matrix(Ho, Wo, 4))                    # (Ho*Wo, 16)
    w_fused = P @ lin_w.astype(jnp.float32).T                   # (Ho*Wo, 32)
    lb = lin_b.astype(jnp.float32).reshape(1, 32)

    # Conv taps + bias as SMEM scalars.
    cparams = jnp.concatenate([conv_w.astype(jnp.float32).reshape(27),
                               conv_b.astype(jnp.float32).reshape(1)])

    TB = _pick_batch_tile(B, H, W, x.dtype.itemsize)
    grid = (B // TB,)

    flops = B * Ho * Wo * (2 * 27 + 2 * 32)
    bytes_accessed = (x.size * x.dtype.itemsize + B * 32 * 4
                      + w_fused.size * 4 + cparams.size * 4 + lb.size * 4)

    kernel = functools.partial(_fused_kernel, Ho=Ho, Wo=Wo)
    return pl.pallas_call(
        kernel,
        out_shape=jax.ShapeDtypeStruct((B, 32), jnp.float32),
        grid=grid,
        in_specs=[
            pl.BlockSpec(memory_space=pltpu.MemorySpace.SMEM),        # conv taps + bias
            pl.BlockSpec((TB, 3, H, W), lambda b: (b, 0, 0, 0)),      # x (batch tile)
            pl.BlockSpec((Ho * Wo, 32), lambda b: (0, 0)),            # fused pool+linear weight
            pl.BlockSpec((1, 32), lambda b: (0, 0)),                  # linear bias
        ],
        out_specs=pl.BlockSpec((TB, 32), lambda b: (b, 0)),
        compiler_params=pltpu.CompilerParams(
            dimension_semantics=("parallel",),
            vmem_limit_bytes=32 * 1024 * 1024),
        cost_estimate=pl.CostEstimate(
            flops=flops, transcendentals=0, bytes_accessed=bytes_accessed),
    )(cparams, x, w_fused, lb)


def reference_forward(x, conv_w, conv_b, lin_w, lin_b):
    """Pure-JAX reference (no Pallas) matching PyTorch semantics."""
    y = jax.lax.conv_general_dilated(
        x, conv_w, window_strides=(1, 1), padding="VALID",
        dimension_numbers=("NCHW", "OIHW", "NCHW"))
    y = y + conv_b[None, :, None, None]
    y = jnp.maximum(y, 0.0)                                     # (B, 1, Ho, Wo)
    Ho, Wo = y.shape[2], y.shape[3]
    hb, wb = _adaptive_bins(Ho, 4), _adaptive_bins(Wo, 4)
    pooled = jnp.stack(
        [jnp.stack([jnp.mean(y[:, :, hs:he, ws:we], axis=(2, 3))
                    for (ws, we) in wb], axis=-1)
         for (hs, he) in hb], axis=-2)                          # (B, 1, 4, 4)
    flat = pooled.reshape(x.shape[0], -1)                       # (B, 16)
    return flat @ lin_w.T + lin_b


if __name__ == "__main__":
    key = jax.random.PRNGKey(0)
    k_x, k_cw, k_cb, k_lw, k_lb = jax.random.split(key, 5)

    B, C, H, W = 2, 3, 16, 16
    x = jax.random.normal(k_x, (B, C, H, W), dtype=jnp.float32)

    # Deterministic synthetic parameters (shapes from the module __init__).
    conv_w = 0.1 * jax.random.normal(k_cw, (1, 3, 3, 3), dtype=jnp.float32)
    conv_b = 0.1 * jax.random.normal(k_cb, (1,), dtype=jnp.float32)
    lin_w = 0.1 * jax.random.normal(k_lw, (32, 16), dtype=jnp.float32)
    lin_b = 0.1 * jax.random.normal(k_lb, (32,), dtype=jnp.float32)

    out = jax.jit(module_forward)(x, conv_w, conv_b, lin_w, lin_b)
    out = jax.block_until_ready(out)

    ref = reference_forward(x, conv_w, conv_b, lin_w, lin_b)
    assert out.shape == (B, 32), out.shape
    # Tolerance (not exact equality): the pool+linear fold changes FP summation order.
    assert jnp.allclose(out, ref, atol=1e-5, rtol=1e-4), (
        f"max abs err {jnp.max(jnp.abs(out - ref))}")

    print("KERNEL_OK")
</pallas_src>

<mosaic_0001>
module attributes {stable_mosaic.version = 11 : i64} {
  func.func @_fused_kernel(%arg0: i32, %arg1: memref<28xf32, #tpu.memory_space<smem>>, %arg2: memref<2x3x16x16xf32, #tpu.memory_space<vmem>>, %arg3: memref<196x32xf32, #tpu.memory_space<vmem>>, %arg4: memref<1x32xf32, #tpu.memory_space<vmem>>, %arg5: memref<2x32xf32, #tpu.memory_space<vmem>>) attributes {dimension_semantics = [#tpu.dimension_semantics<parallel>], iteration_bounds = array<i64: 1>, scalar_prefetch = 0 : i64, scratch_operands = 0 : i64, tpu.core_type = #tpu.core_type<tc>, window_params = [{transform_indices = @transform_0, window_bounds = array<i64: 28>}, {transform_indices = @transform_1, window_bounds = array<i64: 2, 3, 16, 16>}, {pipeline_mode = #tpu.pipeline_mode<synchronous>, transform_indices = @transform_2, window_bounds = array<i64: 196, 32>}, {pipeline_mode = #tpu.pipeline_mode<synchronous>, transform_indices = @transform_3, window_bounds = array<i64: 1, 32>}, {transform_indices = @transform_4, window_bounds = array<i64: 2, 32>}]} {
    %c0 = arith.constant 0 : index
    %c0_0 = arith.constant 0 : index
    %c0_1 = arith.constant 0 : index
    %c0_2 = arith.constant 0 : index
    %0 = vector.load %arg2[%c0, %c0_0, %c0_1, %c0_2] : memref<2x3x16x16xf32, #tpu.memory_space<vmem>>, vector<2x3x16x16xf32>
    %cst = arith.constant 0.000000e+00 : f32
    %1 = vector.broadcast %cst : f32 to vector<2x14x14xf32>
    %2 = vector.extract_strided_slice %0 {offsets = [0, 0, 0, 0], sizes = [2, 3, 16, 14], strides = [1, 1, 1, 1]} : vector<2x3x16x16xf32> to vector<2x3x16x14xf32>
    %3 = vector.extract_strided_slice %2 {offsets = [0, 0, 0, 0], sizes = [2, 3, 14, 14], strides = [1, 1, 1, 1]} : vector<2x3x16x14xf32> to vector<2x3x14x14xf32>
    %4 = vector.extract_strided_slice %3 {offsets = [0, 0, 0, 0], sizes = [2, 1, 14, 14], strides = [1, 1, 1, 1]} : vector<2x3x14x14xf32> to vector<2x1x14x14xf32>
    %5 = vector.shape_cast %4 : vector<2x1x14x14xf32> to vector<2x14x14xf32>
    %c0_3 = arith.constant 0 : index
    %6 = memref.load %arg1[%c0_3] : memref<28xf32, #tpu.memory_space<smem>>
    %7 = vector.broadcast %6 : f32 to vector<2x14x14xf32>
    %8 = arith.mulf %5, %7 : vector<2x14x14xf32>
    %9 = arith.addf %1, %8 : vector<2x14x14xf32>
    %10 = vector.extract_strided_slice %3 {offsets = [0, 1, 0, 0], sizes = [2, 1, 14, 14], strides = [1, 1, 1, 1]} : vector<2x3x14x14xf32> to vector<2x1x14x14xf32>
    %11 = vector.shape_cast %10 : vector<2x1x14x14xf32> to vector<2x14x14xf32>
    %c9 = arith.constant 9 : index
    %12 = memref.load %arg1[%c9] : memref<28xf32, #tpu.memory_space<smem>>
    %13 = vector.broadcast %12 : f32 to vector<2x14x14xf32>
    %14 = arith.mulf %11, %13 : vector<2x14x14xf32>
    %15 = arith.addf %9, %14 : vector<2x14x14xf32>
    %16 = vector.extract_strided_slice %3 {offsets = [0, 2, 0, 0], sizes = [2, 1, 14, 14], strides = [1, 1, 1, 1]} : vector<2x3x14x14xf32> to vector<2x1x14x14xf32>
    %17 = vector.shape_cast %16 : vector<2x1x14x14xf32> to vector<2x14x14xf32>
    %c18 = arith.constant 18 : index
    %18 = memref.load %arg1[%c18] : memref<28xf32, #tpu.memory_space<smem>>
    %19 = vector.broadcast %18 : f32 to vector<2x14x14xf32>
    %20 = arith.mulf %17, %19 : vector<2x14x14xf32>
    %21 = arith.addf %15, %20 : vector<2x14x14xf32>
    %22 = vector.extract_strided_slice %2 {offsets = [0, 0, 1, 0], sizes = [2, 3, 14, 14], strides = [1, 1, 1, 1]} : vector<2x3x16x14xf32> to vector<2x3x14x14xf32>
    %23 = vector.extract_strided_slice %22 {offsets = [0, 0, 0, 0], sizes = [2, 1, 14, 14], strides = [1, 1, 1, 1]} : vector<2x3x14x14xf32> to vector<2x1x14x14xf32>
    %24 = vector.shape_cast %23 : vector<2x1x14x14xf32> to vector<2x14x14xf32>
    %c3 = arith.constant 3 : index
    %25 = memref.load %arg1[%c3] : memref<28xf32, #tpu.memory_space<smem>>
    %26 = vector.broadcast %25 : f32 to vector<2x14x14xf32>
    %27 = arith.mulf %24, %26 : vector<2x14x14xf32>
    %28 = arith.addf %21, %27 : vector<2x14x14xf32>
    %29 = vector.extract_strided_slice %22 {offsets = [0, 1, 0, 0], sizes = [2, 1, 14, 14], strides = [1, 1, 1, 1]} : vector<2x3x14x14xf32> to vector<2x1x14x14xf32>
    %30 = vector.shape_cast %29 : vector<2x1x14x14xf32> to vector<2x14x14xf32>
    %c12 = arith.constant 12 : index
    %31 = memref.load %arg1[%c12] : memref<28xf32, #tpu.memory_space<smem>>
    %32 = vector.broadcast %31 : f32 to vector<2x14x14xf32>
    %33 = arith.mulf %30, %32 : vector<2x14x14xf32>
    %34 = arith.addf %28, %33 : vector<2x14x14xf32>
    %35 = vector.extract_strided_slice %22 {offsets = [0, 2, 0, 0], sizes = [2, 1, 14, 14], strides = [1, 1, 1, 1]} : vector<2x3x14x14xf32> to vector<2x1x14x14xf32>
    %36 = vector.shape_cast %35 : vector<2x1x14x14xf32> to vector<2x14x14xf32>
    %c21 = arith.constant 21 : index
    %37 = memref.load %arg1[%c21] : memref<28xf32, #tpu.memory_space<smem>>
    %38 = vector.broadcast %37 : f32 to vector<2x14x14xf32>
    %39 = arith.mulf %36, %38 : vector<2x14x14xf32>
    %40 = arith.addf %34, %39 : vector<2x14x14xf32>
    %41 = vector.extract_strided_slice %2 {offsets = [0, 0, 2, 0], sizes = [2, 3, 14, 14], strides = [1, 1, 1, 1]} : vector<2x3x16x14xf32> to vector<2x3x14x14xf32>
    %42 = vector.extract_strided_slice %41 {offsets = [0, 0, 0, 0], sizes = [2, 1, 14, 14], strides = [1, 1, 1, 1]} : vector<2x3x14x14xf32> to vector<2x1x14x14xf32>
    %43 = vector.shape_cast %42 : vector<2x1x14x14xf32> to vector<2x14x14xf32>
    %c6 = arith.constant 6 : index
    %44 = memref.load %arg1[%c6] : memref<28xf32, #tpu.memory_space<smem>>
    %45 = vector.broadcast %44 : f32 to vector<2x14x14xf32>
    %46 = arith.mulf %43, %45 : vector<2x14x14xf32>
    %47 = arith.addf %40, %46 : vector<2x14x14xf32>
    %48 = vector.extract_strided_slice %41 {offsets = [0, 1, 0, 0], sizes = [2, 1, 14, 14], strides = [1, 1, 1, 1]} : vector<2x3x14x14xf32> to vector<2x1x14x14xf32>
    %49 = vector.shape_cast %48 : vector<2x1x14x14xf32> to vector<2x14x14xf32>
    %c15 = arith.constant 15 : index
    %50 = memref.load %arg1[%c15] : memref<28xf32, #tpu.memory_space<smem>>
    %51 = vector.broadcast %50 : f32 to vector<2x14x14xf32>
    %52 = arith.mulf %49, %51 : vector<2x14x14xf32>
    %53 = arith.addf %47, %52 : vector<2x14x14xf32>
    %54 = vector.extract_strided_slice %41 {offsets = [0, 2, 0, 0], sizes = [2, 1, 14, 14], strides = [1, 1, 1, 1]} : vector<2x3x14x14xf32> to vector<2x1x14x14xf32>
    %55 = vector.shape_cast %54 : vector<2x1x14x14xf32> to vector<2x14x14xf32>
    %c24 = arith.constant 24 : index
    %56 = memref.load %arg1[%c24] : memref<28xf32, #tpu.memory_space<smem>>
    %57 = vector.broadcast %56 : f32 to vector<2x14x14xf32>
    %58 = arith.mulf %55, %57 : vector<2x14x14xf32>
    %59 = arith.addf %53, %58 : vector<2x14x14xf32>
    %60 = vector.extract_strided_slice %0 {offsets = [0, 0, 0, 1], sizes = [2, 3, 16, 14], strides = [1, 1, 1, 1]} : vector<2x3x16x16xf32> to vector<2x3x16x14xf32>
    %61 = vector.extract_strided_slice %60 {offsets = [0, 0, 0, 0], sizes = [2, 3, 14, 14], strides = [1, 1, 1, 1]} : vector<2x3x16x14xf32> to vector<2x3x14x14xf32>
    %62 = vector.extract_strided_slice %61 {offsets = [0, 0, 0, 0], sizes = [2, 1, 14, 14], strides = [1, 1, 1, 1]} : vector<2x3x14x14xf32> to vector<2x1x14x14xf32>
    %63 = vector.shape_cast %62 : vector<2x1x14x14xf32> to vector<2x14x14xf32>
    %c1 = arith.constant 1 : index
    %64 = memref.load %arg1[%c1] : memref<28xf32, #tpu.memory_space<smem>>
    %65 = vector.broadcast %64 : f32 to vector<2x14x14xf32>
    %66 = arith.mulf %63, %65 : vector<2x14x14xf32>
    %67 = arith.addf %59, %66 : vector<2x14x14xf32>
    %68 = vector.extract_strided_slice %61 {offsets = [0, 1, 0, 0], sizes = [2, 1, 14, 14], strides = [1, 1, 1, 1]} : vector<2x3x14x14xf32> to vector<2x1x14x14xf32>
    %69 = vector.shape_cast %68 : vector<2x1x14x14xf32> to vector<2x14x14xf32>
    %c10 = arith.constant 10 : index
    %70 = memref.load %arg1[%c10] : memref<28xf32, #tpu.memory_space<smem>>
    %71 = vector.broadcast %70 : f32 to vector<2x14x14xf32>
    %72 = arith.mulf %69, %71 : vector<2x14x14xf32>
    %73 = arith.addf %67, %72 : vector<2x14x14xf32>
    %74 = vector.extract_strided_slice %61 {offsets = [0, 2, 0, 0], sizes = [2, 1, 14, 14], strides = [1, 1, 1, 1]} : vector<2x3x14x14xf32> to vector<2x1x14x14xf32>
    %75 = vector.shape_cast %74 : vector<2x1x14x14xf32> to vector<2x14x14xf32>
    %c19 = arith.constant 19 : index
    %76 = memref.load %arg1[%c19] : memref<28xf32, #tpu.memory_space<smem>>
    %77 = vector.broadcast %76 : f32 to vector<2x14x14xf32>
    %78 = arith.mulf %75, %77 : vector<2x14x14xf32>
    %79 = arith.addf %73, %78 : vector<2x14x14xf32>
    %80 = vector.extract_strided_slice %60 {offsets = [0, 0, 1, 0], sizes = [2, 3, 14, 14], strides = [1, 1, 1, 1]} : vector<2x3x16x14xf32> to vector<2x3x14x14xf32>
    %81 = vector.extract_strided_slice %80 {offsets = [0, 0, 0, 0], sizes = [2, 1, 14, 14], strides = [1, 1, 1, 1]} : vector<2x3x14x14xf32> to vector<2x1x14x14xf32>
    %82 = vector.shape_cast %81 : vector<2x1x14x14xf32> to vector<2x14x14xf32>
    %c4 = arith.constant 4 : index
    %83 = memref.load %arg1[%c4] : memref<28xf32, #tpu.memory_space<smem>>
    %84 = vector.broadcast %83 : f32 to vector<2x14x14xf32>
    %85 = arith.mulf %82, %84 : vector<2x14x14xf32>
    %86 = arith.addf %79, %85 : vector<2x14x14xf32>
    %87 = vector.extract_strided_slice %80 {offsets = [0, 1, 0, 0], sizes = [2, 1, 14, 14], strides = [1, 1, 1, 1]} : vector<2x3x14x14xf32> to vector<2x1x14x14xf32>
    %88 = vector.shape_cast %87 : vector<2x1x14x14xf32> to vector<2x14x14xf32>
    %c13 = arith.constant 13 : index
    %89 = memref.load %arg1[%c13] : memref<28xf32, #tpu.memory_space<smem>>
    %90 = vector.broadcast %89 : f32 to vector<2x14x14xf32>
    %91 = arith.mulf %88, %90 : vector<2x14x14xf32>
    %92 = arith.addf %86, %91 : vector<2x14x14xf32>
    %93 = vector.extract_strided_slice %80 {offsets = [0, 2, 0, 0], sizes = [2, 1, 14, 14], strides = [1, 1, 1, 1]} : vector<2x3x14x14xf32> to vector<2x1x14x14xf32>
    %94 = vector.shape_cast %93 : vector<2x1x14x14xf32> to vector<2x14x14xf32>
    %c22 = arith.constant 22 : index
    %95 = memref.load %arg1[%c22] : memref<28xf32, #tpu.memory_space<smem>>
    %96 = vector.broadcast %95 : f32 to vector<2x14x14xf32>
    %97 = arith.mulf %94, %96 : vector<2x14x14xf32>
    %98 = arith.addf %92, %97 : vector<2x14x14xf32>
    %99 = vector.extract_strided_slice %60 {offsets = [0, 0, 2, 0], sizes = [2, 3, 14, 14], strides = [1, 1, 1, 1]} : vector<2x3x16x14xf32> to vector<2x3x14x14xf32>
    %100 = vector.extract_strided_slice %99 {offsets = [0, 0, 0, 0], sizes = [2, 1, 14, 14], strides = [1, 1, 1, 1]} : vector<2x3x14x14xf32> to vector<2x1x14x14xf32>
    %101 = vector.shape_cast %100 : vector<2x1x14x14xf32> to vector<2x14x14xf32>
    %c7 = arith.constant 7 : index
    %102 = memref.load %arg1[%c7] : memref<28xf32, #tpu.memory_space<smem>>
    %103 = vector.broadcast %102 : f32 to vector<2x14x14xf32>
    %104 = arith.mulf %101, %103 : vector<2x14x14xf32>
    %105 = arith.addf %98, %104 : vector<2x14x14xf32>
    %106 = vector.extract_strided_slice %99 {offsets = [0, 1, 0, 0], sizes = [2, 1, 14, 14], strides = [1, 1, 1, 1]} : vector<2x3x14x14xf32> to vector<2x1x14x14xf32>
    %107 = vector.shape_cast %106 : vector<2x1x14x14xf32> to vector<2x14x14xf32>
    %c16 = arith.constant 16 : index
    %108 = memref.load %arg1[%c16] : memref<28xf32, #tpu.memory_space<smem>>
    %109 = vector.broadcast %108 : f32 to vector<2x14x14xf32>
    %110 = arith.mulf %107, %109 : vector<2x14x14xf32>
    %111 = arith.addf %105, %110 : vector<2x14x14xf32>
    %112 = vector.extract_strided_slice %99 {offsets = [0, 2, 0, 0], sizes = [2, 1, 14, 14], strides = [1, 1, 1, 1]} : vector<2x3x14x14xf32> to vector<2x1x14x14xf32>
    %113 = vector.shape_cast %112 : vector<2x1x14x14xf32> to vector<2x14x14xf32>
    %c25 = arith.constant 25 : index
    %114 = memref.load %arg1[%c25] : memref<28xf32, #tpu.memory_space<smem>>
    %115 = vector.broadcast %114 : f32 to vector<2x14x14xf32>
    %116 = arith.mulf %113, %115 : vector<2x14x14xf32>
    %117 = arith.addf %111, %116 : vector<2x14x14xf32>
    %118 = vector.extract_strided_slice %0 {offsets = [0, 0, 0, 2], sizes = [2, 3, 16, 14], strides = [1, 1, 1, 1]} : vector<2x3x16x16xf32> to vector<2x3x16x14xf32>
    %119 = vector.extract_strided_slice %118 {offsets = [0, 0, 0, 0], sizes = [2, 3, 14, 14], strides = [1, 1, 1, 1]} : vector<2x3x16x14xf32> to vector<2x3x14x14xf32>
    %120 = vector.extract_strided_slice %119 {offsets = [0, 0, 0, 0], sizes = [2, 1, 14, 14], strides = [1, 1, 1, 1]} : vector<2x3x14x14xf32> to vector<2x1x14x14xf32>
    %121 = vector.shape_cast %120 : vector<2x1x14x14xf32> to vector<2x14x14xf32>
    %c2 = arith.constant 2 : index
    %122 = memref.load %arg1[%c2] : memref<28xf32, #tpu.memory_space<smem>>
    %123 = vector.broadcast %122 : f32 to vector<2x14x14xf32>
    %124 = arith.mulf %121, %123 : vector<2x14x14xf32>
    %125 = arith.addf %117, %124 : vector<2x14x14xf32>
    %126 = vector.extract_strided_slice %119 {offsets = [0, 1, 0, 0], sizes = [2, 1, 14, 14], strides = [1, 1, 1, 1]} : vector<2x3x14x14xf32> to vector<2x1x14x14xf32>
    %127 = vector.shape_cast %126 : vector<2x1x14x14xf32> to vector<2x14x14xf32>
    %c11 = arith.constant 11 : index
    %128 = memref.load %arg1[%c11] : memref<28xf32, #tpu.memory_space<smem>>
    %129 = vector.broadcast %128 : f32 to vector<2x14x14xf32>
    %130 = arith.mulf %127, %129 : vector<2x14x14xf32>
    %131 = arith.addf %125, %130 : vector<2x14x14xf32>
    %132 = vector.extract_strided_slice %119 {offsets = [0, 2, 0, 0], sizes = [2, 1, 14, 14], strides = [1, 1, 1, 1]} : vector<2x3x14x14xf32> to vector<2x1x14x14xf32>
    %133 = vector.shape_cast %132 : vector<2x1x14x14xf32> to vector<2x14x14xf32>
    %c20 = arith.constant 20 : index
    %134 = memref.load %arg1[%c20] : memref<28xf32, #tpu.memory_space<smem>>
    %135 = vector.broadcast %134 : f32 to vector<2x14x14xf32>
    %136 = arith.mulf %133, %135 : vector<2x14x14xf32>
    %137 = arith.addf %131, %136 : vector<2x14x14xf32>
    %138 = vector.extract_strided_slice %118 {offsets = [0, 0, 1, 0], sizes = [2, 3, 14, 14], strides = [1, 1, 1, 1]} : vector<2x3x16x14xf32> to vector<2x3x14x14xf32>
    %139 = vector.extract_strided_slice %138 {offsets = [0, 0, 0, 0], sizes = [2, 1, 14, 14], strides = [1, 1, 1, 1]} : vector<2x3x14x14xf32> to vector<2x1x14x14xf32>
    %140 = vector.shape_cast %139 : vector<2x1x14x14xf32> to vector<2x14x14xf32>
    %c5 = arith.constant 5 : index
    %141 = memref.load %arg1[%c5] : memref<28xf32, #tpu.memory_space<smem>>
    %142 = vector.broadcast %141 : f32 to vector<2x14x14xf32>
    %143 = arith.mulf %140, %142 : vector<2x14x14xf32>
    %144 = arith.addf %137, %143 : vector<2x14x14xf32>
    %145 = vector.extract_strided_slice %138 {offsets = [0, 1, 0, 0], sizes = [2, 1, 14, 14], strides = [1, 1, 1, 1]} : vector<2x3x14x14xf32> to vector<2x1x14x14xf32>
    %146 = vector.shape_cast %145 : vector<2x1x14x14xf32> to vector<2x14x14xf32>
    %c14 = arith.constant 14 : index
    %147 = memref.load %arg1[%c14] : memref<28xf32, #tpu.memory_space<smem>>
    %148 = vector.broadcast %147 : f32 to vector<2x14x14xf32>
    %149 = arith.mulf %146, %148 : vector<2x14x14xf32>
    %150 = arith.addf %144, %149 : vector<2x14x14xf32>
    %151 = vector.extract_strided_slice %138 {offsets = [0, 2, 0, 0], sizes = [2, 1, 14, 14], strides = [1, 1, 1, 1]} : vector<2x3x14x14xf32> to vector<2x1x14x14xf32>
    %152 = vector.shape_cast %151 : vector<2x1x14x14xf32> to vector<2x14x14xf32>
    %c23 = arith.constant 23 : index
    %153 = memref.load %arg1[%c23] : memref<28xf32, #tpu.memory_space<smem>>
    %154 = vector.broadcast %153 : f32 to vector<2x14x14xf32>
    %155 = arith.mulf %152, %154 : vector<2x14x14xf32>
    %156 = arith.addf %150, %155 : vector<2x14x14xf32>
    %157 = vector.extract_strided_slice %118 {offsets = [0, 0, 2, 0], sizes = [2, 3, 14, 14], strides = [1, 1, 1, 1]} : vector<2x3x16x14xf32> to vector<2x3x14x14xf32>
    %158 = vector.extract_strided_slice %157 {offsets = [0, 0, 0, 0], sizes = [2, 1, 14, 14], strides = [1, 1, 1, 1]} : vector<2x3x14x14xf32> to vector<2x1x14x14xf32>
    %159 = vector.shape_cast %158 : vector<2x1x14x14xf32> to vector<2x14x14xf32>
    %c8 = arith.constant 8 : index
    %160 = memref.load %arg1[%c8] : memref<28xf32, #tpu.memory_space<smem>>
    %161 = vector.broadcast %160 : f32 to vector<2x14x14xf32>
    %162 = arith.mulf %159, %161 : vector<2x14x14xf32>
    %163 = arith.addf %156, %162 : vector<2x14x14xf32>
    %164 = vector.extract_strided_slice %157 {offsets = [0, 1, 0, 0], sizes = [2, 1, 14, 14], strides = [1, 1, 1, 1]} : vector<2x3x14x14xf32> to vector<2x1x14x14xf32>
    %165 = vector.shape_cast %164 : vector<2x1x14x14xf32> to vector<2x14x14xf32>
    %c17 = arith.constant 17 : index
    %166 = memref.load %arg1[%c17] : memref<28xf32, #tpu.memory_space<smem>>
    %167 = vector.broadcast %166 : f32 to vector<2x14x14xf32>
    %168 = arith.mulf %165, %167 : vector<2x14x14xf32>
    %169 = arith.addf %163, %168 : vector<2x14x14xf32>
    %170 = vector.extract_strided_slice %157 {offsets = [0, 2, 0, 0], sizes = [2, 1, 14, 14], strides = [1, 1, 1, 1]} : vector<2x3x14x14xf32> to vector<2x1x14x14xf32>
    %171 = vector.shape_cast %170 : vector<2x1x14x14xf32> to vector<2x14x14xf32>
    %c26 = arith.constant 26 : index
    %172 = memref.load %arg1[%c26] : memref<28xf32, #tpu.memory_space<smem>>
    %173 = vector.broadcast %172 : f32 to vector<2x14x14xf32>
    %174 = arith.mulf %171, %173 : vector<2x14x14xf32>
    %175 = arith.addf %169, %174 : vector<2x14x14xf32>
    %c27 = arith.constant 27 : index
    %176 = memref.load %arg1[%c27] : memref<28xf32, #tpu.memory_space<smem>>
    %177 = vector.broadcast %176 : f32 to vector<2x14x14xf32>
    %178 = arith.addf %175, %177 : vector<2x14x14xf32>
    %cst_4 = arith.constant 0.000000e+00 : f32
    %179 = vector.broadcast %cst_4 : f32 to vector<2x14x14xf32>
    %180 = arith.maximumf %178, %179 : vector<2x14x14xf32>
    %181 = vector.shape_cast %180 : vector<2x14x14xf32> to vector<2x196xf32>
    %c0_5 = arith.constant 0 : index
    %c0_6 = arith.constant 0 : index
    %182 = vector.load %arg3[%c0_5, %c0_6] : memref<196x32xf32, #tpu.memory_space<vmem>>, vector<196x32xf32>
    %cst_7 = arith.constant dense<0.000000e+00> : vector<2x32xf32>
    %183 = tpu.matmul %181, %182, %cst_7 {dimension_numbers = #tpu.dot_dimension_numbers<[1], [0], [0], [1], [0, 0, 1, 1], [], []>} : vector<2x196xf32>, vector<196x32xf32>, vector<2x32xf32> -> vector<2x32xf32>
    %c0_8 = arith.constant 0 : index
    %c0_9 = arith.constant 0 : index
    %184 = vector.load %arg4[%c0_8, %c0_9] : memref<1x32xf32, #tpu.memory_space<vmem>>, vector<1x32xf32>
    %185 = vector.broadcast %184 : vector<1x32xf32> to vector<2x32xf32>
    %186 = arith.addf %183, %185 : vector<2x32xf32>
    %c0_10 = arith.constant 0 : index
    %c0_11 = arith.constant 0 : index
    %187 = vector.load %arg5[%c0_10, %c0_11] : memref<2x32xf32, #tpu.memory_space<vmem>>, vector<2x32xf32>
    tpu.vector_store %arg5[%c0_10, %c0_11], %186 {strides = array<i32>} : memref<2x32xf32, #tpu.memory_space<vmem>>, vector<2x32xf32>,
    return
  }
  func.func @transform_0(%arg0: i32) -> i32 {
    %c0_i32 = arith.constant 0 : i32
    %c0_i32_0 = arith.constant 0 : i32
    return %c0_i32 : i32
  }
  func.func @transform_1(%arg0: i32) -> (i32, i32, i32, i32) {
    %c0_i32 = arith.constant 0 : i32
    %c0_i32_0 = arith.constant 0 : i32
    %c0_i32_1 = arith.constant 0 : i32
    %c0_i32_2 = arith.constant 0 : i32
    return %arg0, %c0_i32, %c0_i32_0, %c0_i32_1 : i32, i32, i32, i32
  }
  func.func @transform_2(%arg0: i32) -> (i32, i32) {
    %c0_i32 = arith.constant 0 : i32
    %c0_i32_0 = arith.constant 0 : i32
    %c0_i32_1 = arith.constant 0 : i32
    return %c0_i32, %c0_i32_0 : i32, i32
  }
  func.func @transform_3(%arg0: i32) -> (i32, i32) {
    %c0_i32 = arith.constant 0 : i32
    %c0_i32_0 = arith.constant 0 : i32
    %c0_i32_1 = arith.constant 0 : i32
    return %c0_i32, %c0_i32_0 : i32, i32
  }
  func.func @transform_4(%arg0: i32) -> (i32, i32) {
    %c0_i32 = arith.constant 0 : i32
    %c0_i32_0 = arith.constant 0 : i32
    return %arg0, %c0_i32 : i32, i32
  }
}

</mosaic_0001>

<llo_original>
// kernel: module_forward.1
$region0: #{module_forward.1}
  #allocation0 [shape = 'u32[]', space=smem, size = 0x4, offset = 0x4, fixed_abs, tag = 'smem constant byte address 0x4 - core index']
  #allocation1 [shape = 'u32[144,128]{1,0:T(1,128)}', space=vmem, size = 0x12000, scoped, tag = 'internal scratch']
  %s0 = inlined_call_operand.vmem [shape: f32[28], index: 0, kind: input, shape index: {}]
  %s1 = inlined_call_operand.vmem [shape: f32[2,3,16,16], index: 1, kind: input, shape index: {}]
  %s2 = inlined_call_operand.vmem [shape: f32[196,32], index: 2, kind: input, shape index: {}]
  %s3 = inlined_call_operand.vmem [shape: f32[1,32], index: 3, kind: input, shape index: {}]
  %s4 = inlined_call_operand.hbm [shape: f32[2,32], index: 4, kind: output, shape index: {}]
  %s5 = sld [smem:[#allocation0]]
  $region30: #{module_forward.1} parent=0
    _
  %s7 = ssub.s32 1, %s5
  %s8 = scalar_select 0, %s7, %s5
  $region1: #{module_forward.1} parent=0
    #allocation2 [shape = 'u8[512]{0}', space=smem, size = 0x200, scoped, tag = 'input window, operand 0, single buffered']
    #allocation3 [shape = 's32[1]{0}', space=sflag, size = 0x4, scoped, tag = 'scoped memory for module_forward.1']
    #allocation4 [shape = 's32[1]{0}', space=sflag, size = 0x4, scoped, tag = 'scoped memory for module_forward.1']
    #allocation5 [shape = 'u8[1024]{0}', space=vmem, size = 0x400, scoped, tag = 'output window, operand 0, single buffered']
    %9 = vsyncpa [#allocation4], 0
    %10 = vsyncpa [#allocation3], 0
    // Predicated region
    $region2: #{module_forward.1} parent=1 // pred_check
      _
    $region3: #{module_forward.1} parent=1 // pred_check_branch
      %12 = sbr.rel (0) target = $region5
    $region4: #{module_forward.1} parent=1 // pred_region
      %s14 = ssub.s32 16, 16
      %15 = vsyncadd [#allocation4], %s14
      %s17 = sshll.u32 %s0, 4
      %s18 = int_to_ptr.vmem [resolvable:$true] %s17
      %20 = dma.vmem_to_smem %s18, 16, [#allocation2], [#allocation4]
    $region5: #{module_forward.1} parent=1 // pred_fallthru
      _
    // Predicated region
    $region6: #{module_forward.1} parent=1 // pred_check
      _
    $region7: #{module_forward.1} parent=1 // pred_check_branch
      %22 = sbr.rel (0) target = $region9
    $region8: #{module_forward.1} parent=1 // pred_region
      _
    $region9: #{module_forward.1} parent=1 // pred_fallthru
      _
    // Predicated region
    $region10: #{module_forward.1} parent=1 // pred_check
      _
    $region11: #{module_forward.1} parent=1 // pred_check_branch
      %24 = sbr.rel (0) target = $region13
    $region12: #{module_forward.1} parent=1 // pred_region
      _
    $region13: #{module_forward.1} parent=1 // pred_fallthru
      _
    // Predicated region
    $region14: #{module_forward.1} parent=1 // pred_check
      _
    $region15: #{module_forward.1} parent=1 // pred_check_branch
      %26 = sbr.rel (0) target = $region17
    $region16: #{module_forward.1} parent=1 // pred_region
      _
    $region17: #{module_forward.1} parent=1 // pred_fallthru
      _
    // Predicated region
    $region18: #{module_forward.1} parent=1 // pred_check
      _
    $region19: #{module_forward.1} parent=1 // pred_check_branch
      %28 = sbr.rel (0) target = $region21
    $region20: #{module_forward.1} parent=1 // pred_region
      %29 = dma.done [#allocation4], 16
    $region21: #{module_forward.1} parent=1 // pred_fallthru
      _
    %30 = sfence
    %v31 = vld [vmem:[%s1] sm:$0xff]
    %v32 = vld [vmem:[%s1 + $0x8] sm:$0xff]
    %v33 = vld [vmem:[%s1 + $0x10] sm:$0xff]
    %v34 = vld [vmem:[%s1 + $0x18] sm:$0xff]
    %v35 = vld [vmem:[%s1 + $0x20] sm:$0xff]
    %v36 = vld [vmem:[%s1 + $0x28] sm:$0xff]
    %v37 = vld [vmem:[%s1 + $0x30] sm:$0xff]
    %v38 = vld [vmem:[%s1 + $0x38] sm:$0xff]
    %v39 = vld [vmem:[%s1 + $0x40] sm:$0xff]
    %v40 = vld [vmem:[%s1 + $0x48] sm:$0xff]
    %v41 = vld [vmem:[%s1 + $0x50] sm:$0xff]
    %v42 = vld [vmem:[%s1 + $0x58] sm:$0xff]
    %s43 = sld [smem:[#allocation2]]
    %v44 = vstv %s43
    %v45 = vmul.f32 %v31, %v44
    %v46 = vmul.f32 %v32, %v44
    %v47 = vmul.f32 %v37, %v44
    %v48 = vmul.f32 %v38, %v44
    %v49 = vadd.f32 %v45, 0.0
    %v50 = vadd.f32 %v46, 0.0
    %v51 = vadd.f32 %v47, 0.0
    %v52 = vadd.f32 %v48, 0.0
    %s53 = sld [smem:[#allocation2 + $0x9]]
    %v54 = vstv %s53
    %v55 = vmul.f32 %v33, %v54
    %v56 = vmul.f32 %v34, %v54
    %v57 = vmul.f32 %v39, %v54
    %v58 = vmul.f32 %v40, %v54
    %v59 = vadd.f32 %v49, %v55
    %v60 = vadd.f32 %v50, %v56
    %v61 = vadd.f32 %v51, %v57
    %v62 = vadd.f32 %v52, %v58
    %s63 = sld [smem:[#allocation2 + $0x12]]
    %v64 = vstv %s63
    %v65 = vmul.f32 %v35, %v64
    %v66 = vmul.f32 %v36, %v64
    %v67 = vmul.f32 %v41, %v64
    %v68 = vmul.f32 %v42, %v64
    %v69 = vadd.f32 %v59, %v65
    %v70 = vadd.f32 %v60, %v66
    %v71 = vadd.f32 %v61, %v67
    %v72 = vadd.f32 %v62, %v68
    %s73 = sld [smem:[#allocation2 + $0x3]]
    %v74 = vstv %s73
    %v75 = vmul.f32 %v31, %v74
    %v76 = vmul.f32 %v32, %v74
    %v77 = vmul.f32 %v37, %v74
    %v78 = vmul.f32 %v38, %v74
    %vm83 = vcmask 1046528
    %v84 = vrot.slane %v75, 1
    %v85 = vrot.slane %v76, 1
    %v86 = vsel %vm83, %v84, %v85
    %v87 = vrot.slane %v77, 1
    %v88 = vrot.slane %v78, 1
    %v89 = vsel %vm83, %v87, %v88
    %v94 = vadd.f32 %v69, %v86
    %v95 = vadd.f32 %v70, %v85
    %v96 = vadd.f32 %v71, %v89
    %v97 = vadd.f32 %v72, %v88
    %s98 = sld [smem:[#allocation2 + $0xc]]
    %v99 = vstv %s98
    %v100 = vmul.f32 %v33, %v99
    %v101 = vmul.f32 %v34, %v99
    %v102 = vmul.f32 %v39, %v99
    %v103 = vmul.f32 %v40, %v99
    %v108 = vrot.slane %v100, 1
    %v109 = vrot.slane %v101, 1
    %v110 = vsel %vm83, %v108, %v109
    %v111 = vrot.slane %v102, 1
    %v112 = vrot.slane %v103, 1
    %v113 = vsel %vm83, %v111, %v112
    %v118 = vadd.f32 %v94, %v110
    %v119 = vadd.f32 %v95, %v109
    %v120 = vadd.f32 %v96, %v113
    %v121 = vadd.f32 %v97, %v112
    %s122 = sld [smem:[#allocation2 + $0x15]]
    %v123 = vstv %s122
    %v124 = vmul.f32 %v35, %v123
    %v125 = vmul.f32 %v36, %v123
    %v126 = vmul.f32 %v41, %v123
    %v127 = vmul.f32 %v42, %v123
    %v132 = vrot.slane %v124, 1
    %v133 = vrot.slane %v125, 1
    %v134 = vsel %vm83, %v132, %v133
    %v135 = vrot.slane %v126, 1
    %v136 = vrot.slane %v127, 1
    %v137 = vsel %vm83, %v135, %v136
    %v142 = vadd.f32 %v118, %v134
    %v143 = vadd.f32 %v119, %v133
    %v144 = vadd.f32 %v120, %v137
    %v145 = vadd.f32 %v121, %v136
    %s146 = sld [smem:[#allocation2 + $0x6]]
    %v147 = vstv %s146
    %v148 = vmul.f32 %v31, %v147
    %v149 = vmul.f32 %v32, %v147
    %v150 = vmul.f32 %v37, %v147
    %v151 = vmul.f32 %v38, %v147
    %vm156 = vcmask 1045504
    %v157 = vrot.slane %v148, 2
    %v158 = vrot.slane %v149, 2
    %v159 = vsel %vm156, %v157, %v158
    %v160 = vrot.slane %v150, 2
    %v161 = vrot.slane %v151, 2
    %v162 = vsel %vm156, %v160, %v161
    %v167 = vadd.f32 %v142, %v159
    %v168 = vadd.f32 %v143, %v158
    %v169 = vadd.f32 %v144, %v162
    %v170 = vadd.f32 %v145, %v161
    %s171 = sld [smem:[#allocation2 + $0xf]]
    %v172 = vstv %s171
    %v173 = vmul.f32 %v33, %v172
    %v174 = vmul.f32 %v34, %v172
    %v175 = vmul.f32 %v39, %v172
    %v176 = vmul.f32 %v40, %v172
    %v181 = vrot.slane %v173, 2
    %v182 = vrot.slane %v174, 2
    %v183 = vsel %vm156, %v181, %v182
    %v184 = vrot.slane %v175, 2
    %v185 = vrot.slane %v176, 2
    %v186 = vsel %vm156, %v184, %v185
    %v191 = vadd.f32 %v167, %v183
    %v192 = vadd.f32 %v168, %v182
    %v193 = vadd.f32 %v169, %v186
    %v194 = vadd.f32 %v170, %v185
    %s195 = sld [smem:[#allocation2 + $0x18]]
    %v196 = vstv %s195
    %v197 = vmul.f32 %v35, %v196
    %v198 = vmul.f32 %v36, %v196
    %v199 = vmul.f32 %v41, %v196
    %v200 = vmul.f32 %v42, %v196
    %v205 = vrot.slane %v197, 2
    %v206 = vrot.slane %v198, 2
    %v207 = vsel %vm156, %v205, %v206
    %v208 = vrot.slane %v199, 2
    %v209 = vrot.slane %v200, 2
    %v210 = vsel %vm156, %v208, %v209
    %v215 = vadd.f32 %v191, %v207
    %v216 = vadd.f32 %v192, %v206
    %v217 = vadd.f32 %v193, %v210
    %v218 = vadd.f32 %v194, %v209
    %s219 = sld [smem:[#allocation2 + $0x1]]
    %v220 = vstv %s219
    %v221 = vmul.f32 %v31, %v220
    %v222 = vmul.f32 %v32, %v220
    %v223 = vmul.f32 %v37, %v220
    %v224 = vmul.f32 %v38, %v220
    %229 = vrot.lane.b32.xlu0 %v221, 127
    %v230 = vpop.permute.xlu0 %229
    %231 = vrot.lane.b32.xlu0 %v222, 127
    %v232 = vpop.permute.xlu0 %231
    %233 = vrot.lane.b32.xlu0 %v223, 127
    %v234 = vpop.permute.xlu0 %233
    %235 = vrot.lane.b32.xlu0 %v224, 127
    %v236 = vpop.permute.xlu0 %235
    %v241 = vadd.f32 %v215, %v230
    %v242 = vadd.f32 %v216, %v232
    %v243 = vadd.f32 %v217, %v234
    %v244 = vadd.f32 %v218, %v236
    %s245 = sld [smem:[#allocation2 + $0xa]]
    %v246 = vstv %s245
    %v247 = vmul.f32 %v33, %v246
    %v248 = vmul.f32 %v34, %v246
    %v249 = vmul.f32 %v39, %v246
    %v250 = vmul.f32 %v40, %v246
    %255 = vrot.lane.b32.xlu0 %v247, 127
    %v256 = vpop.permute.xlu0 %255
    %257 = vrot.lane.b32.xlu0 %v248, 127
    %v258 = vpop.permute.xlu0 %257
    %259 = vrot.lane.b32.xlu0 %v249, 127
    %v260 = vpop.permute.xlu0 %259
    %261 = vrot.lane.b32.xlu0 %v250, 127
    %v262 = vpop.permute.xlu0 %261
    %v267 = vadd.f32 %v241, %v256
    %v268 = vadd.f32 %v242, %v258
    %v269 = vadd.f32 %v243, %v260
    %v270 = vadd.f32 %v244, %v262
    %s271 = sld [smem:[#allocation2 + $0x13]]
    %v272 = vstv %s271
    %v273 = vmul.f32 %v35, %v272
    %v274 = vmul.f32 %v36, %v272
    %v275 = vmul.f32 %v41, %v272
    %v276 = vmul.f32 %v42, %v272
    %281 = vrot.lane.b32.xlu0 %v273, 127
    %v282 = vpop.permute.xlu0 %281
    %283 = vrot.lane.b32.xlu0 %v274, 127
    %v284 = vpop.permute.xlu0 %283
    %285 = vrot.lane.b32.xlu0 %v275, 127
    %v286 = vpop.permute.xlu0 %285
    %287 = vrot.lane.b32.xlu0 %v276, 127
    %v288 = vpop.permute.xlu0 %287
    %v293 = vadd.f32 %v267, %v282
    %v294 = vadd.f32 %v268, %v284
    %v295 = vadd.f32 %v269, %v286
    %v296 = vadd.f32 %v270, %v288
    %s297 = sld [smem:[#allocation2 + $0x4]]
    %v298 = vstv %s297
    %v299 = vmul.f32 %v31, %v298
    %v300 = vmul.f32 %v32, %v298
    %v301 = vmul.f32 %v37, %v298
    %v302 = vmul.f32 %v38, %v298
    %v307 = vrot.slane %v299, 1
    %v308 = vrot.slane %v300, 1
    %v309 = vsel %vm83, %v307, %v308
    %v310 = vrot.slane %v301, 1
    %v311 = vrot.slane %v302, 1
    %v312 = vsel %vm83, %v310, %v311
    %313 = vrot.lane.b32.xlu0 %v309, 127
    %v314 = vpop.permute.xlu0 %313
    %315 = vrot.lane.b32.xlu0 %v308, 127
    %v316 = vpop.permute.xlu0 %315
    %317 = vrot.lane.b32.xlu0 %v312, 127
    %v318 = vpop.permute.xlu0 %317
    %319 = vrot.lane.b32.xlu0 %v311, 127
    %v320 = vpop.permute.xlu0 %319
    %v325 = vadd.f32 %v293, %v314
    %v326 = vadd.f32 %v294, %v316
    %v327 = vadd.f32 %v295, %v318
    %v328 = vadd.f32 %v296, %v320
    %s329 = sld [smem:[#allocation2 + $0xd]]
    %v330 = vstv %s329
    %v331 = vmul.f32 %v33, %v330
    %v332 = vmul.f32 %v34, %v330
    %v333 = vmul.f32 %v39, %v330
    %v334 = vmul.f32 %v40, %v330
    %v339 = vrot.slane %v331, 1
    %v340 = vrot.slane %v332, 1
    %v341 = vsel %vm83, %v339, %v340
    %v342 = vrot.slane %v333, 1
    %v343 = vrot.slane %v334, 1
    %v344 = vsel %vm83, %v342, %v343
    %345 = vrot.lane.b32.xlu0 %v341, 127
    %v346 = vpop.permute.xlu0 %345
    %347 = vrot.lane.b32.xlu0 %v340, 127
    %v348 = vpop.permute.xlu0 %347
    %349 = vrot.lane.b32.xlu0 %v344, 127
    %v350 = vpop.permute.xlu0 %349
    %351 = vrot.lane.b32.xlu0 %v343, 127
    %v352 = vpop.permute.xlu0 %351
    %v357 = vadd.f32 %v325, %v346
    %v358 = vadd.f32 %v326, %v348
    %v359 = vadd.f32 %v327, %v350
    %v360 = vadd.f32 %v328, %v352
    %s361 = sld [smem:[#allocation2 + $0x16]]
    %v362 = vstv %s361
    %v363 = vmul.f32 %v35, %v362
    %v364 = vmul.f32 %v36, %v362
    %v365 = vmul.f32 %v41, %v362
    %v366 = vmul.f32 %v42, %v362
    %v371 = vrot.slane %v363, 1
    %v372 = vrot.slane %v364, 1
    %v373 = vsel %vm83, %v371, %v372
    %v374 = vrot.slane %v365, 1
    %v375 = vrot.slane %v366, 1
    %v376 = vsel %vm83, %v374, %v375
    %377 = vrot.lane.b32.xlu0 %v373, 127
    %v378 = vpop.permute.xlu0 %377
    %379 = vrot.lane.b32.xlu0 %v372, 127
    %v380 = vpop.permute.xlu0 %379
    %381 = vrot.lane.b32.xlu0 %v376, 127
    %v382 = vpop.permute.xlu0 %381
    %383 = vrot.lane.b32.xlu0 %v375, 127
    %v384 = vpop.permute.xlu0 %383
    %v389 = vadd.f32 %v357, %v378
    %v390 = vadd.f32 %v358, %v380
    %v391 = vadd.f32 %v359, %v382
    %v392 = vadd.f32 %v360, %v384
    %s393 = sld [smem:[#allocation2 + $0x7]]
    %v394 = vstv %s393
    %v395 = vmul.f32 %v31, %v394
    %v396 = vmul.f32 %v32, %v394
    %v397 = vmul.f32 %v37, %v394
    %v398 = vmul.f32 %v38, %v394
    %v403 = vrot.slane %v395, 2
    %v404 = vrot.slane %v396, 2
    %v405 = vsel %vm156, %v403, %v404
    %v406 = vrot.slane %v397, 2
    %v407 = vrot.slane %v398, 2
    %v408 = vsel %vm156, %v406, %v407
    %409 = vrot.lane.b32.xlu0 %v405, 127
    %v410 = vpop.permute.xlu0 %409
    %411 = vrot.lane.b32.xlu0 %v404, 127
    %v412 = vpop.permute.xlu0 %411
    %413 = vrot.lane.b32.xlu0 %v408, 127
    %v414 = vpop.permute.xlu0 %413
    %415 = vrot.lane.b32.xlu0 %v407, 127
    %v416 = vpop.permute.xlu0 %415
    %v421 = vadd.f32 %v389, %v410
    %v422 = vadd.f32 %v390, %v412
    %v423 = vadd.f32 %v391, %v414
    %v424 = vadd.f32 %v392, %v416
    %s425 = sld [smem:[#allocation2 + $0x10]]
    %v426 = vstv %s425
    %v427 = vmul.f32 %v33, %v426
    %v428 = vmul.f32 %v34, %v426
    %v429 = vmul.f32 %v39, %v426
    %v430 = vmul.f32 %v40, %v426
    %v435 = vrot.slane %v427, 2
    %v436 = vrot.slane %v428, 2
    %v437 = vsel %vm156, %v435, %v436
    %v438 = vrot.slane %v429, 2
    %v439 = vrot.slane %v430, 2
    %v440 = vsel %vm156, %v438, %v439
    %441 = vrot.lane.b32.xlu0 %v437, 127
    %v442 = vpop.permute.xlu0 %441
    %443 = vrot.lane.b32.xlu0 %v436, 127
    %v444 = vpop.permute.xlu0 %443
    %445 = vrot.lane.b32.xlu0 %v440, 127
    %v446 = vpop.permute.xlu0 %445
    %447 = vrot.lane.b32.xlu0 %v439, 127
    %v448 = vpop.permute.xlu0 %447
    %v453 = vadd.f32 %v421, %v442
    %v454 = vadd.f32 %v422, %v444
    %v455 = vadd.f32 %v423, %v446
    %v456 = vadd.f32 %v424, %v448
    %s457 = sld [smem:[#allocation2 + $0x19]]
    %v458 = vstv %s457
    %v459 = vmul.f32 %v35, %v458
    %v460 = vmul.f32 %v36, %v458
    %v461 = vmul.f32 %v41, %v458
    %v462 = vmul.f32 %v42, %v458
    %v467 = vrot.slane %v459, 2
    %v468 = vrot.slane %v460, 2
    %v469 = vsel %vm156, %v467, %v468
    %v470 = vrot.slane %v461, 2
    %v471 = vrot.slane %v462, 2
    %v472 = vsel %vm156, %v470, %v471
    %473 = vrot.lane.b32.xlu0 %v469, 127
    %v474 = vpop.permute.xlu0 %473
    %475 = vrot.lane.b32.xlu0 %v468, 127
    %v476 = vpop.permute.xlu0 %475
    %477 = vrot.lane.b32.xlu0 %v472, 127
    %v478 = vpop.permute.xlu0 %477
    %479 = vrot.lane.b32.xlu0 %v471, 127
    %v480 = vpop.permute.xlu0 %479
    %v485 = vadd.f32 %v453, %v474
    %v486 = vadd.f32 %v454, %v476
    %v487 = vadd.f32 %v455, %v478
    %v488 = vadd.f32 %v456, %v480
    %s489 = sld [smem:[#allocation2 + $0x2]]
    %v490 = vstv %s489
    %v491 = vmul.f32 %v31, %v490
    %v492 = vmul.f32 %v32, %v490
    %v493 = vmul.f32 %v37, %v490
    %v494 = vmul.f32 %v38, %v490
    %499 = vrot.lane.b32.xlu0 %v491, 126
    %v500 = vpop.permute.xlu0 %499
    %501 = vrot.lane.b32.xlu0 %v492, 126
    %v502 = vpop.permute.xlu0 %501
    %503 = vrot.lane.b32.xlu0 %v493, 126
    %v504 = vpop.permute.xlu0 %503
    %505 = vrot.lane.b32.xlu0 %v494, 126
    %v506 = vpop.permute.xlu0 %505
    %v511 = vadd.f32 %v485, %v500
    %v512 = vadd.f32 %v486, %v502
    %v513 = vadd.f32 %v487, %v504
    %v514 = vadd.f32 %v488, %v506
    %s515 = sld [smem:[#allocation2 + $0xb]]
    %v516 = vstv %s515
    %v517 = vmul.f32 %v33, %v516
    %v518 = vmul.f32 %v34, %v516
    %v519 = vmul.f32 %v39, %v516
    %v520 = vmul.f32 %v40, %v516
    %525 = vrot.lane.b32.xlu0 %v517, 126
    %v526 = vpop.permute.xlu0 %525
    %527 = vrot.lane.b32.xlu0 %v518, 126
    %v528 = vpop.permute.xlu0 %527
    %529 = vrot.lane.b32.xlu0 %v519, 126
    %v530 = vpop.permute.xlu0 %529
    %531 = vrot.lane.b32.xlu0 %v520, 126
    %v532 = vpop.permute.xlu0 %531
    %v537 = vadd.f32 %v511, %v526
    %v538 = vadd.f32 %v512, %v528
    %v539 = vadd.f32 %v513, %v530
    %v540 = vadd.f32 %v514, %v532
    %s541 = sld [smem:[#allocation2 + $0x14]]
    %v542 = vstv %s541
    %v543 = vmul.f32 %v35, %v542
    %v544 = vmul.f32 %v36, %v542
    %v545 = vmul.f32 %v41, %v542
    %v546 = vmul.f32 %v42, %v542
    %551 = vrot.lane.b32.xlu0 %v543, 126
    %v552 = vpop.permute.xlu0 %551
    %553 = vrot.lane.b32.xlu0 %v544, 126
    %v554 = vpop.permute.xlu0 %553
    %555 = vrot.lane.b32.xlu0 %v545, 126
    %v556 = vpop.permute.xlu0 %555
    %557 = vrot.lane.b32.xlu0 %v546, 126
    %v558 = vpop.permute.xlu0 %557
    %v563 = vadd.f32 %v537, %v552
    %v564 = vadd.f32 %v538, %v554
    %v565 = vadd.f32 %v539, %v556
    %v566 = vadd.f32 %v540, %v558
    %s567 = sld [smem:[#allocation2 + $0x5]]
    %v568 = vstv %s567
    %v569 = vmul.f32 %v31, %v568
    %v570 = vmul.f32 %v32, %v568
    %v571 = vmul.f32 %v37, %v568
    %v572 = vmul.f32 %v38, %v568
    %v577 = vrot.slane %v569, 1
    %v578 = vrot.slane %v570, 1
    %v579 = vsel %vm83, %v577, %v578
    %v580 = vrot.slane %v571, 1
    %v581 = vrot.slane %v572, 1
    %v582 = vsel %vm83, %v580, %v581
    %583 = vrot.lane.b32.xlu0 %v579, 126
    %v584 = vpop.permute.xlu0 %583
    %585 = vrot.lane.b32.xlu0 %v578, 126
    %v586 = vpop.permute.xlu0 %585
    %587 = vrot.lane.b32.xlu0 %v582, 126
    %v588 = vpop.permute.xlu0 %587
    %589 = vrot.lane.b32.xlu0 %v581, 126
    %v590 = vpop.permute.xlu0 %589
    %v595 = vadd.f32 %v563, %v584
    %v596 = vadd.f32 %v564, %v586
    %v597 = vadd.f32 %v565, %v588
    %v598 = vadd.f32 %v566, %v590
    %s599 = sld [smem:[#allocation2 + $0xe]]
    %v600 = vstv %s599
    %v601 = vmul.f32 %v33, %v600
    %v602 = vmul.f32 %v34, %v600
    %v603 = vmul.f32 %v39, %v600
    %v604 = vmul.f32 %v40, %v600
    %v609 = vrot.slane %v601, 1
    %v610 = vrot.slane %v602, 1
    %v611 = vsel %vm83, %v609, %v610
    %v612 = vrot.slane %v603, 1
    %v613 = vrot.slane %v604, 1
    %v614 = vsel %vm83, %v612, %v613
    %615 = vrot.lane.b32.xlu0 %v611, 126
    %v616 = vpop.permute.xlu0 %615
    %617 = vrot.lane.b32.xlu0 %v610, 126
    %v618 = vpop.permute.xlu0 %617
    %619 = vrot.lane.b32.xlu0 %v614, 126
    %v620 = vpop.permute.xlu0 %619
    %621 = vrot.lane.b32.xlu0 %v613, 126
    %v622 = vpop.permute.xlu0 %621
    %v627 = vadd.f32 %v595, %v616
    %v628 = vadd.f32 %v596, %v618
    %v629 = vadd.f32 %v597, %v620
    %v630 = vadd.f32 %v598, %v622
    %s631 = sld [smem:[#allocation2 + $0x17]]
    %v632 = vstv %s631
    %v633 = vmul.f32 %v35, %v632
    %v634 = vmul.f32 %v36, %v632
    %v635 = vmul.f32 %v41, %v632
    %v636 = vmul.f32 %v42, %v632
    %v641 = vrot.slane %v633, 1
    %v642 = vrot.slane %v634, 1
    %v643 = vsel %vm83, %v641, %v642
    %v644 = vrot.slane %v635, 1
    %v645 = vrot.slane %v636, 1
    %v646 = vsel %vm83, %v644, %v645
    %647 = vrot.lane.b32.xlu0 %v643, 126
    %v648 = vpop.permute.xlu0 %647
    %649 = vrot.lane.b32.xlu0 %v642, 126
    %v650 = vpop.permute.xlu0 %649
    %651 = vrot.lane.b32.xlu0 %v646, 126
    %v652 = vpop.permute.xlu0 %651
    %653 = vrot.lane.b32.xlu0 %v645, 126
    %v654 = vpop.permute.xlu0 %653
    %v659 = vadd.f32 %v627, %v648
    %v660 = vadd.f32 %v628, %v650
    %v661 = vadd.f32 %v629, %v652
    %v662 = vadd.f32 %v630, %v654
    %s663 = sld [smem:[#allocation2 + $0x8]]
    %v664 = vstv %s663
    %v665 = vmul.f32 %v31, %v664
    %v666 = vmul.f32 %v32, %v664
    %v667 = vmul.f32 %v37, %v664
    %v668 = vmul.f32 %v38, %v664
    %v673 = vrot.slane %v665, 2
    %v674 = vrot.slane %v666, 2
    %v675 = vsel %vm156, %v673, %v674
    %v676 = vrot.slane %v667, 2
    %v677 = vrot.slane %v668, 2
    %v678 = vsel %vm156, %v676, %v677
    %679 = vrot.lane.b32.xlu0 %v675, 126
    %v680 = vpop.permute.xlu0 %679
    %681 = vrot.lane.b32.xlu0 %v674, 126
    %v682 = vpop.permute.xlu0 %681
    %683 = vrot.lane.b32.xlu0 %v678, 126
    %v684 = vpop.permute.xlu0 %683
    %685 = vrot.lane.b32.xlu0 %v677, 126
    %v686 = vpop.permute.xlu0 %685
    %v691 = vadd.f32 %v659, %v680
    %v692 = vadd.f32 %v660, %v682
    %v693 = vadd.f32 %v661, %v684
    %v694 = vadd.f32 %v662, %v686
    %s695 = sld [smem:[#allocation2 + $0x11]]
    %v696 = vstv %s695
    %v697 = vmul.f32 %v33, %v696
    %v698 = vmul.f32 %v34, %v696
    %v699 = vmul.f32 %v39, %v696
    %v700 = vmul.f32 %v40, %v696
    %v705 = vrot.slane %v697, 2
    %v706 = vrot.slane %v698, 2
    %v707 = vsel %vm156, %v705, %v706
    %v708 = vrot.slane %v699, 2
    %v709 = vrot.slane %v700, 2
    %v710 = vsel %vm156, %v708, %v709
    %711 = vrot.lane.b32.xlu0 %v707, 126
    %v712 = vpop.permute.xlu0 %711
    %713 = vrot.lane.b32.xlu0 %v706, 126
    %v714 = vpop.permute.xlu0 %713
    %715 = vrot.lane.b32.xlu0 %v710, 126
    %v716 = vpop.permute.xlu0 %715
    %717 = vrot.lane.b32.xlu0 %v709, 126
    %v718 = vpop.permute.xlu0 %717
    %v723 = vadd.f32 %v691, %v712
    %v724 = vadd.f32 %v692, %v714
    %v725 = vadd.f32 %v693, %v716
    %v726 = vadd.f32 %v694, %v718
    %s727 = sld [smem:[#allocation2 + $0x1a]]
    %v728 = vstv %s727
    %v729 = vmul.f32 %v35, %v728
    %v730 = vmul.f32 %v36, %v728
    %v731 = vmul.f32 %v41, %v728
    %v732 = vmul.f32 %v42, %v728
    %v737 = vrot.slane %v729, 2
    %v738 = vrot.slane %v730, 2
    %v739 = vsel %vm156, %v737, %v738
    %v740 = vrot.slane %v731, 2
    %v741 = vrot.slane %v732, 2
    %v742 = vsel %vm156, %v740, %v741
    %743 = vrot.lane.b32.xlu0 %v739, 126
    %v744 = vpop.permute.xlu0 %743
    %745 = vrot.lane.b32.xlu0 %v738, 126
    %v746 = vpop.permute.xlu0 %745
    %747 = vrot.lane.b32.xlu0 %v742, 126
    %v748 = vpop.permute.xlu0 %747
    %749 = vrot.lane.b32.xlu0 %v741, 126
    %v750 = vpop.permute.xlu0 %749
    %v755 = vadd.f32 %v723, %v744
    %v756 = vadd.f32 %v724, %v746
    %v757 = vadd.f32 %v725, %v748
    %v758 = vadd.f32 %v726, %v750
    %s759 = sld [smem:[#allocation2 + $0x1b]]
    %v760 = vstv %s759
    %v761 = vadd.f32 %v755, %v760
    %v762 = vadd.f32 %v756, %v760
    %v763 = vadd.f32 %v757, %v760
    %v764 = vadd.f32 %v758, %v760
    %v765 = vmax.f32 %v761, 0.0
    %v766 = vmax.f32 %v762, 0.0
    %v767 = vmax.f32 %v763, 0.0
    %v768 = vmax.f32 %v764, 0.0
    %v769 = vcombine.high %v765, 0.0
    %v771 = vunpack.c.l.s4 1983009808
    %v772 = vunpack.c.0.s8 %v771
    %v773 = vlaneseq
    %v774 = vshrl.u32 %v773, 7
    %v775 = vsub.s32 %v772, %v774
    %v776 = vrot.slane %v765, %v775
    %v778 = vunpack.c.l.s4 1983009808
    %v779 = vunpack.c.0.s8 %v778
    %v780 = vlaneseq
    %v781 = vshrl.u32 %v780, 7
    %v782 = vsub.s32 %v779, %v781
    %v783 = vrot.slane %v769, %v782
    %v784 = vcombine.high %v767, 0.0
    %v786 = vunpack.c.l.s4 1983009808
    %v787 = vunpack.c.0.s8 %v786
    %v788 = vlaneseq
    %v789 = vshrl.u32 %v788, 7
    %v790 = vsub.s32 %v787, %v789
    %v791 = vrot.slane %v767, %v790
    %v793 = vunpack.c.l.s4 1983009808
    %v794 = vunpack.c.0.s8 %v793
    %v795 = vlaneseq
    %v796 = vshrl.u32 %v795, 7
    %v797 = vsub.s32 %v794, %v796
    %v798 = vrot.slane %v784, %v797
    %v799 = vcombine.low %v776, %v791
    %v800 = vcombine.high %v776, %v791
    %v802 = vunpack.c.l.s4 1934713408
    %v803 = vunpack.c.0.s8 %v802
    %v804 = vlaneseq
    %v805 = vshrl.u32 %v804, 7
    %v806 = vsub.s32 %v803, %v805
    %v807 = vrot.slane %v799, %v806
    %v809 = vunpack.c.l.s4 1934713408
    %v810 = vunpack.c.0.s8 %v809
    %v811 = vlaneseq
    %v812 = vshrl.u32 %v811, 7
    %v813 = vsub.s32 %v810, %v812
    %v814 = vrot.slane %v800, %v813
    %v815 = vcombine.low %v783, %v798
    %v816 = vcombine.high %v783, %v798
    %v818 = vunpack.c.l.s4 1934713408
    %v819 = vunpack.c.0.s8 %v818
    %v820 = vlaneseq
    %v821 = vshrl.u32 %v820, 7
    %v822 = vsub.s32 %v819, %v821
    %v823 = vrot.slane %v815, %v822
    %v825 = vunpack.c.l.s4 1934713408
    %v826 = vunpack.c.0.s8 %v825
    %v827 = vlaneseq
    %v828 = vshrl.u32 %v827, 7
    %v829 = vsub.s32 %v826, %v828
    %v830 = vrot.slane %v816, %v829
    %v831 = vcombine.high %v807, 0.0
    %v832 = vcombine.high %v814, 0.0
    %v833 = vcombine.high %v823, 0.0
    %v834 = vcombine.high %v830, 0.0
    %v836 = vunpack.c.l.s4 1983009808
    %v837 = vunpack.c.0.s8 %v836
    %v838 = vlaneseq
    %v839 = vshrl.u32 %v838, 7
    %v840 = vsub.s32 %v837, %v839
    %v841 = vrot.slane %v766, %v840
    %v842 = vcombine.high %v766, 0.0
    %v844 = vunpack.c.l.s4 1983009808
    %v845 = vunpack.c.0.s8 %v844
    %v846 = vlaneseq
    %v847 = vshrl.u32 %v846, 7
    %v848 = vsub.s32 %v845, %v847
    %v849 = vrot.slane %v768, %v848
    %v850 = vcombine.high %v768, 0.0
    %v851 = vcombine.low %v841, %v849
    %v852 = vcombine.high %v841, %v849
    %v854 = vunpack.c.l.s4 1934713408
    %v855 = vunpack.c.0.s8 %v854
    %v856 = vlaneseq
    %v857 = vshrl.u32 %v856, 7
    %v858 = vsub.s32 %v855, %v857
    %v859 = vrot.slane %v851, %v858
    %v861 = vunpack.c.l.s4 1934713408
    %v862 = vunpack.c.0.s8 %v861
    %v863 = vlaneseq
    %v864 = vshrl.u32 %v863, 7
    %v865 = vsub.s32 %v862, %v864
    %v866 = vrot.slane %v852, %v865
    %v867 = vcombine.low %v842, %v850
    %v869 = vunpack.c.l.s4 1934713408
    %v870 = vunpack.c.0.s8 %v869
    %v871 = vlaneseq
    %v872 = vshrl.u32 %v871, 7
    %v873 = vsub.s32 %v870, %v872
    %v874 = vrot.slane %v867, %v873
    %v875 = vcombine.high %v859, 0.0
    %v876 = vcombine.high %v866, 0.0
    %v877 = vcombine.high %v874, 0.0
    %879 = vrot.lane.b32.xlu0 %v831, 14
    %v880 = vpop.permute.xlu0 %879
    %883 = vrot.lane.b32.xlu0 %v814, 28
    %v884 = vpop.permute.xlu0 %883
    %887 = vrot.lane.b32.xlu0 %v832, 42
    %v888 = vpop.permute.xlu0 %887
    %891 = vrot.lane.b32.xlu0 %v823, 56
    %v892 = vpop.permute.xlu0 %891
    %895 = vrot.lane.b32.xlu0 %v833, 70
    %v896 = vpop.permute.xlu0 %895
    %899 = vrot.lane.b32.xlu0 %v830, 84
    %v900 = vpop.permute.xlu0 %899
    %903 = vrot.lane.b32.xlu0 %v834, 98
    %v904 = vpop.permute.xlu0 %903
    %907 = vrot.lane.b32.xlu0 %v859, 112
    %v908 = vpop.permute.xlu0 %907
    %911 = vrot.lane.b32.xlu0 %v875, 126
    %v912 = vpop.permute.xlu0 %911
    %915 = vrot.lane.b32.xlu0 %v866, 12
    %v916 = vpop.permute.xlu0 %915
    %919 = vrot.lane.b32.xlu0 %v876, 26
    %v920 = vpop.permute.xlu0 %919
    %923 = vrot.lane.b32.xlu0 %v874, 40
    %v924 = vpop.permute.xlu0 %923
    %927 = vrot.lane.b32.xlu0 %v877, 54
    %v928 = vpop.permute.xlu0 %927
    %vm930 = vcmask 113664
    %v931 = vsel %vm930, %v807, %v880
    %vm932 = vcmask 228352
    %v933 = vsel %vm932, %v931, %v884
    %vm934 = vcmask 343040
    %v935 = vsel %vm934, %v933, %v888
    %vm936 = vcmask 457728
    %v937 = vsel %vm936, %v935, %v892
    %vm938 = vcmask 572416
    %v939 = vsel %vm938, %v937, %v896
    %vm940 = vcmask 687104
    %v941 = vsel %vm940, %v939, %v900
    %vm942 = vcmask 801792
    %v943 = vsel %vm942, %v941, %v904
    %vm944 = vcmask 916480
    %v945 = vsel %vm944, %v943, %v908
    %vm946 = vcmask 1031168
    %v947 = vsel %vm946, %v945, %v912
    %vm948 = vcmask 97280
    %v949 = vsel %vm948, %v912, %v916
    %vm950 = vcmask 211968
    %v951 = vsel %vm950, %v949, %v920
    %vm952 = vcmask 326656
    %v953 = vsel %vm952, %v951, %v924
    %vm954 = vcmask 441344
    %v955 = vsel %vm954, %v953, %v928
    %v956 = vld [vmem:[%s2] sm:$0xff]
    %v957 = vld [vmem:[%s2 + $0x8] sm:$0xff]
    %v958 = vld [vmem:[%s2 + $0x10] sm:$0xff]
    %v959 = vld [vmem:[%s2 + $0x18] sm:$0xff]
    %v960 = vld [vmem:[%s2 + $0x20] sm:$0xff]
    %v961 = vld [vmem:[%s2 + $0x28] sm:$0xff]
    %v962 = vld [vmem:[%s2 + $0x30] sm:$0xff]
    %v963 = vld [vmem:[%s2 + $0x38] sm:$0xff]
    %v964 = vld [vmem:[%s2 + $0x40] sm:$0xff]
    %v965 = vld [vmem:[%s2 + $0x48] sm:$0xff]
    %v966 = vld [vmem:[%s2 + $0x50] sm:$0xff]
    %v967 = vld [vmem:[%s2 + $0x58] sm:$0xff]
    %v968 = vld [vmem:[%s2 + $0x60] sm:$0xff]
    %v969 = vld [vmem:[%s2 + $0x68] sm:$0xff]
    %v970 = vld [vmem:[%s2 + $0x70] sm:$0xff]
    %v971 = vld [vmem:[%s2 + $0x78] sm:$0xff]
    %v972 = vld [vmem:[%s2 + $0x80] sm:$0xff]
    %v973 = vld [vmem:[%s2 + $0x88] sm:$0xff]
    %v974 = vld [vmem:[%s2 + $0x90] sm:$0xff]
    %v975 = vld [vmem:[%s2 + $0x98] sm:$0xff]
    %v976 = vld [vmem:[%s2 + $0xa0] sm:$0xff]
    %v977 = vld [vmem:[%s2 + $0xa8] sm:$0xff]
    %v978 = vld [vmem:[%s2 + $0xb0] sm:$0xff]
    %v979 = vld [vmem:[%s2 + $0xb8] sm:$0xff]
    %v980 = vld [vmem:[%s2 + $0xc0] sm:$0xf]
    %v981 = vld [vmem:[%s3] sm:$0x1]
    %v983 = vlaneseq
    %v984 = vshrl.u32 %v983, 7
    %v985 = vsub.s32 0, %v984
    %v986 = vrot.slane %v981, %v985
    %vm988 = vcmask 556032
    %v990 = vsel %vm988, %v955, 0
    %vm992 = vcmask 1043456
    %v994 = vsel %vm992, %v980, 0
    %996 = vmatprep.subr.mxu0 0.0
    %997 = vmatpush1.msra.mxu0 %v956
    %998 = vmatprep.subr.mxu0 0.0
    %999 = vmatpush1.msra.mxu0 %v957
    %1000 = vmatprep.subr.mxu0 0.0
    %1001 = vmatpush1.msra.mxu0 %v958
    %1002 = vmatprep.subr.mxu0 0.0
    %1003 = vmatpush1.msra.mxu0 %v959
    %1004 = vmatprep.subr.mxu0 0.0
    %1005 = vmatpush1.msra.mxu0 %v960
    %1006 = vmatprep.subr.mxu0 0.0
    %1007 = vmatpush1.msra.mxu0 %v961
    %1008 = vmatprep.subr.mxu0 0.0
    %1009 = vmatpush1.msra.mxu0 %v962
    %1010 = vmatprep.subr.mxu0 0.0
    %1011 = vmatpush1.msra.mxu0 %v963
    %1012 = vmatprep.subr.mxu0 0.0
    %1013 = vmatpush1.msra.mxu0 %v964
    %1014 = vmatprep.subr.mxu0 0.0
    %1015 = vmatpush1.msra.mxu0 %v965
    %1016 = vmatprep.subr.mxu0 0.0
    %1017 = vmatpush1.msra.mxu0 %v966
    %1018 = vmatprep.subr.mxu0 0.0
    %1019 = vmatpush1.msra.mxu0 %v967
    %1020 = vmatprep.subr.mxu0 0.0
    %1021 = vmatpush1.msra.mxu0 %v968
    %1022 = vmatprep.subr.mxu0 0.0
    %1023 = vmatpush1.msra.mxu0 %v969
    %1024 = vmatprep.subr.mxu0 0.0
    %1025 = vmatpush1.msra.mxu0 %v970
    %1026 = vmatprep.subr.mxu0 0.0
    %1027 = vmatpush1.msra.mxu0 %v971
    %1028 = vmatprep.subr.mxu0 0.0
    %1029 = vmatpush1.msra.mxu0 %v972
    %1030 = vmatprep.subr.mxu0 0.0
    %1031 = vmatpush1.msra.mxu0 %v973
    %1032 = vmatprep.subr.mxu0 0.0
    %1033 = vmatpush1.msra.mxu0 %v974
    %1034 = vmatprep.subr.mxu0 0.0
    %1035 = vmatpush1.msra.mxu0 %v975
    %1036 = vmatprep.subr.mxu0 0.0
    %1037 = vmatpush1.msra.mxu0 %v976
    %1038 = vmatprep.subr.mxu0 0.0
    %1039 = vmatpush1.msra.mxu0 %v977
    %1040 = vmatprep.subr.mxu0 0.0
    %1041 = vmatpush1.msra.mxu0 %v978
    %1042 = vmatprep.subr.mxu0 0.0
    %1043 = vmatpush1.msra.mxu0 %v979
    %1044 = vmatprep.subr.mxu0 0.0
    %1045 = vmatpush1.msra.mxu0 %v994
    %1046 = vmatprep.subr.mxu0 0.0
    %1047 = vmatpush1.msra.mxu0 0.0
    %1048 = vmatprep.subr.mxu0 0.0
    %1049 = vmatpush1.msra.mxu0 0.0
    %1050 = vmatprep.subr.mxu0 0.0
    %1051 = vmatpush1.msra.mxu0 0.0
    %1052 = vmatprep.subr.mxu0 0.0
    %1053 = vmatpush1.msra.mxu0 0.0
    %1054 = vmatprep.subr.mxu0 0.0
    %1055 = vmatpush1.msra.mxu0 0.0
    %1056 = vmatprep.subr.mxu0 0.0
    %1057 = vmatpush1.msra.mxu0 0.0
    %1058 = vmatprep.subr.mxu0 0.0
    %1059 = vmatpush1.msra.mxu0 0.0
    %1060 = vmatprep.mubr.f32.mxu0 %v990
    %1061 = vmatmul.mubr.f32.gmra.mrb[0].mxu0 %v947
    %v1062 = vpop.f32.mrb[0].mxu0
    %v1063 = vadd.f32 %v986, %v1062
    %v1064 = vpop.f32.mrb[0].mxu0
    %1065 = vdwg.mxu0
    %vm1066 = vcmask 254976
    %1067 = vst.msk [vmem:[#allocation5] sm:$0x3] %vm1066, %v1063
    // Predicated region
    $region22: #{module_forward.1} parent=1 // pred_check
      _
    $region23: #{module_forward.1} parent=1 // pred_check_branch
      %1069 = sbr.rel (0) target = $region25
    $region24: #{module_forward.1} parent=1 // pred_region
      %s1071 = ssub.s32 32, 32
      %1072 = vsyncadd [#allocation3], %s1071
      %s1074 = sshll.u32 [#allocation5], 4
      %s1075 = int_to_ptr.vmem [resolvable:$true] %s1074
      %1077 = dma.vmem_to_hbm [thread:$0]  %s1075, 32, %s4, [#allocation3]
    $region25: #{module_forward.1} parent=1 // pred_fallthru
      _
    // Predicated region
    $region26: #{module_forward.1} parent=1 // pred_check
      _
    $region27: #{module_forward.1} parent=1 // pred_check_branch
      %1079 = sbr.rel (0) target = $region29
    $region28: #{module_forward.1} parent=1 // pred_region
      %1080 = dma.done [#allocation3], 32
    $region29: #{module_forward.1} parent=1 // pred_fallthru
      _
    %1081 = vsyncpa [#allocation3], 1
    %1082 = vsyncpa [#allocation4], 1

</llo_original>
